<compile_context>
chip_gen: v5e
topology: v5e:2x2
jax: 0.10.0
libtpu: 0.0.40
codegen_flags: <defaults>
</compile_context>

<pallas_src>
import functools

import jax
import jax.numpy as jnp
from jax.experimental import pallas as pl
from jax.experimental.pallas import tpu as pltpu


# --------------------------------------------------------------------------- config (synthetic)
class config:
    # Synthetic stand-ins for the facial-AU config constants used by FeatureExtraction.
    INDS = [0, 1, 2, 3, 4, 5, 6, 7]
    AU_CENTERS_LEFT = [21, 18, 38, 41, 48, 50, 57, 36]
    AU_CENTERS_RIGHT = [22, 25, 43, 46, 54, 52, 57, 45]
    LOCATION_SCALE = [0.5, -0.5, 1.0, 0.0, 0.25, -0.25, 0.75, 0.33]
    IMG_SIZE = 256


# --------------------------------------------------------------------------- hardware awareness
def _vmem_capacity_bytes():
    try:
        cap = int(pltpu.get_tpu_info().vmem_capacity_bytes)
        if cap > 0:
            return cap
    except Exception:
        pass
    return 64 * 1024 * 1024  # conservative default (v7x per-TC VMEM)


_VMEM_CAP = _vmem_capacity_bytes()
# ~75% of physical VMEM, capped at 96 MiB: v5e/v6e (128 MiB) -> 96 MiB, v7x (64 MiB) -> 48 MiB.
_VMEM_LIMIT = int(min((_VMEM_CAP * 3) // 4, 96 * 1024 * 1024))
_SMALL_K_MAX = 16  # at/below this the 1x1-conv projection runs on the VPU, not the MXU


def _tile_caps():
    # (tm_cap, tn_cap, tk_cap): larger tiles on 128 MiB parts (v5e/v6e), conservative on v7x.
    if _VMEM_CAP >= 100 * 1024 * 1024:
        return 1024, 512, 512
    return 512, 256, 512


def _round_up(x, m):
    return ((x + m - 1) // m) * m


def _pick_tile(dim, cap, quantum):
    """Largest tile <= cap that avoids wrapper-side padding: the full dim if it fits, else the
    largest multiple-of-`quantum` divisor of dim; falls back to `cap` (-> padding) if none."""
    if dim <= cap:
        return dim
    start = cap - (cap % quantum)
    for t in range(start, quantum - 1, -quantum):
        if dim % t == 0:
            return t
    return cap


# ------------------------------------------------------------------- tiled MXU matmul + bias (+ReLU)
def _matmul_bias_kernel(x_ref, w_ref, b_ref, o_ref, acc_ref, *, apply_relu, use_bf16):
    k = pl.program_id(2)

    @pl.when(k == 0)
    def _init():
        # Fold the bias into the accumulator init (no per-step bias add / extra epilogue op).
        acc_ref[...] = jnp.broadcast_to(b_ref[...].astype(jnp.float32), acc_ref.shape)

    x = x_ref[...]
    w = w_ref[...]
    if use_bf16:  # bf16 MXU operands, f32 accumulation
        x = x.astype(jnp.bfloat16)
        w = w.astype(jnp.bfloat16)
    acc_ref[...] += jnp.dot(x, w, preferred_element_type=jnp.float32)

    @pl.when(k == pl.num_programs(2) - 1)
    def _finalize():
        out = acc_ref[...]
        if apply_relu:
            out = jnp.maximum(out, 0.0)
        o_ref[...] = out.astype(o_ref.dtype)


def pallas_matmul_bias(x2d, w, b, *, relu=False, use_bf16=True):
    """x2d: (M, K), w: (K, N), b: (N,) -> (M, N) f32.  Tiled + pipelined over (M, N, K)."""
    M, K = x2d.shape
    K2, N = w.shape
    assert K == K2 and b.shape == (N,)

    tm_cap, tn_cap, tk_cap = _tile_caps()
    tm = _pick_tile(M, tm_cap, 8)
    tn = _pick_tile(N, tn_cap, 128)
    tk = _pick_tile(K, tk_cap, 128)
    Mp, Np, Kp = _round_up(M, tm), _round_up(N, tn), _round_up(K, tk)
    # With dividing tiles (the common case) no wrapper-side padding pass is emitted at all.
    xp = x2d if (Mp, Kp) == (M, K) else jnp.pad(x2d, ((0, Mp - M), (0, Kp - K)))
    wp = w if (Kp, Np) == (K, N) else jnp.pad(w, ((0, Kp - K), (0, Np - N)))
    bp = (b if Np == N else jnp.pad(b, (0, Np - N))).reshape(1, Np)
    grid = (Mp // tm, Np // tn, Kp // tk)

    out = pl.pallas_call(
        functools.partial(_matmul_bias_kernel, apply_relu=relu, use_bf16=use_bf16),
        out_shape=jax.ShapeDtypeStruct((Mp, Np), jnp.float32),
        grid_spec=pltpu.PrefetchScalarGridSpec(
            num_scalar_prefetch=0,
            grid=grid,
            in_specs=[
                pl.BlockSpec((tm, tk), lambda i, j, k: (i, k)),
                pl.BlockSpec((tk, tn), lambda i, j, k: (k, j)),
                pl.BlockSpec((1, tn), lambda i, j, k: (0, j)),   # bias block: constant across k
            ],
            out_specs=pl.BlockSpec((tm, tn), lambda i, j, k: (i, j)),
            scratch_shapes=[pltpu.VMEM((tm, tn), jnp.float32)],
        ),
        compiler_params=pltpu.CompilerParams(
            dimension_semantics=("parallel", "parallel", "arbitrary"),
            vmem_limit_bytes=_VMEM_LIMIT,
        ),
        cost_estimate=pl.CostEstimate(
            flops=2 * Mp * Np * Kp,
            transcendentals=0,
            bytes_accessed=4 * (Mp * Kp + Kp * Np + Mp * Np),
        ),
    )(xp, wp, bp)

    if (Mp, Np) != (M, N):
        out = out[:M, :N]
    return out


# ------------------------------------------------------------------- small-K 1x1 projection (VPU)
def _proj_small_k_kernel(x_ref, w_ref, b_ref, o_ref, *, apply_relu):
    # x_ref: (tm, K) with K tiny (e.g. 3 RGB channels) -> a K-deep contraction would waste ~97%
    # of the MXU, so do K broadcast-FMAs on the VPU instead.
    x = x_ref[...].astype(jnp.float32)                      # (tm, K)
    w = w_ref[...].astype(jnp.float32)                      # (K, tn)
    acc = jnp.broadcast_to(b_ref[...].astype(jnp.float32), o_ref.shape)   # (tm, tn)
    for k in range(x_ref.shape[1]):                         # static unroll, K is tiny
        acc = acc + x[:, k:k + 1] * w[k:k + 1, :]
    if apply_relu:
        acc = jnp.maximum(acc, 0.0)
    o_ref[...] = acc.astype(o_ref.dtype)


def pallas_proj_small_k(x2d, w, b, *, relu=False):
    """x2d: (M, K) with small K, w: (K, N), b: (N,) -> (M, N) f32.  VPU broadcast-FMA kernel."""
    M, K = x2d.shape
    K2, N = w.shape
    assert K == K2 and b.shape == (N,)

    tm_cap, tn_cap, _ = _tile_caps()
    tm = _pick_tile(M, tm_cap, 8)
    tn = _pick_tile(N, tn_cap, 128)
    Mp, Np = _round_up(M, tm), _round_up(N, tn)
    xp = x2d if Mp == M else jnp.pad(x2d, ((0, Mp - M), (0, 0)))
    w_p = w if Np == N else jnp.pad(w, ((0, 0), (0, Np - N)))
    bp = (b if Np == N else jnp.pad(b, (0, Np - N))).reshape(1, Np)

    out = pl.pallas_call(
        functools.partial(_proj_small_k_kernel, apply_relu=relu),
        out_shape=jax.ShapeDtypeStruct((Mp, Np), jnp.float32),
        grid=(Mp // tm, Np // tn),
        in_specs=[
            pl.BlockSpec((tm, K), lambda i, j: (i, 0)),     # K == full dim: no K padding needed
            pl.BlockSpec((K, tn), lambda i, j: (0, j)),
            pl.BlockSpec((1, tn), lambda i, j: (0, j)),
        ],
        out_specs=pl.BlockSpec((tm, tn), lambda i, j: (i, j)),
        compiler_params=pltpu.CompilerParams(
            dimension_semantics=("parallel", "parallel"),
            vmem_limit_bytes=_VMEM_LIMIT,
        ),
        cost_estimate=pl.CostEstimate(
            flops=2 * Mp * Np * K,
            transcendentals=0,
            bytes_accessed=4 * (Mp * K + K * Np + Mp * Np),
        ),
    )(xp, w_p, bp)

    if (Mp, Np) != (M, N):
        out = out[:M, :N]
    return out


def pallas_linear(x2d, w, b, *, relu=False):
    """Dispatch: tiny contraction depths stay off the MXU."""
    if x2d.shape[1] <= _SMALL_K_MAX:
        return pallas_proj_small_k(x2d, w, b, relu=relu)
    return pallas_matmul_bias(x2d, w, b, relu=relu)


# --------------------------------------------- fused bilinear-resize + AU gather + shared linear
def _blend_linear_kernel(s_ref, f_ref, w_ref, b_ref, o_ref, *, use_bf16):
    # s_ref: (bb, R, HW) bilinear-blend/gather matrix, f_ref: (bb, HW, C) backbone features,
    # w_ref: (C, E) shared nn.Linear weight, b_ref: (1, E) bias, o_ref: (bb, R, E).
    w = w_ref[...]
    if use_bf16:
        w = w.astype(jnp.bfloat16)
    bias = b_ref[...].astype(jnp.float32)                    # (1, E)
    for i in range(s_ref.shape[0]):                          # static unroll over the batch block
        s = s_ref[i]                                         # (R, HW)
        f = f_ref[i]                                         # (HW, C)
        if use_bf16:                                         # bf16 MXU operands, f32 accumulation
            s = s.astype(jnp.bfloat16)
            f = f.astype(jnp.bfloat16)
        g = jnp.dot(s, f, preferred_element_type=jnp.float32)            # gather+blend on the MXU
        if use_bf16:
            g = g.astype(jnp.bfloat16)
        o = jnp.dot(g, w, preferred_element_type=jnp.float32) + bias     # fused shared linear
        o_ref[i] = o.astype(o_ref.dtype)


def pallas_blend_linear(s_mat, feat_flat, w, bias, *, use_bf16=True):
    """s_mat: (B, R, HW), feat_flat: (B, HW, C), w: (C, E), bias: (E,) -> (B, R, E) f32."""
    B, R, HW = s_mat.shape
    B2, HW2, C = feat_flat.shape
    C2, E = w.shape
    assert (B2, HW2, C2) == (B, HW, C) and bias.shape == (E,)

    # Collapse the whole batch into a single grid step when it comfortably fits VMEM
    # (one launch, resident W, no per-batch grid-step overhead); else one batch per step.
    per_batch_bytes = 4 * (R * HW + HW * C + R * E)
    bb = B if 3 * B * per_batch_bytes <= _VMEM_LIMIT else 1
    grid = (B // bb,)

    return pl.pallas_call(
        functools.partial(_blend_linear_kernel, use_bf16=use_bf16),
        out_shape=jax.ShapeDtypeStruct((B, R, E), jnp.float32),
        grid=grid,
        in_specs=[
            pl.BlockSpec((bb, R, HW), lambda g: (g, 0, 0)),
            pl.BlockSpec((bb, HW, C), lambda g: (g, 0, 0)),
            pl.BlockSpec((C, E), lambda g: (0, 0)),
            pl.BlockSpec((1, E), lambda g: (0, 0)),
        ],
        out_specs=pl.BlockSpec((bb, R, E), lambda g: (g, 0, 0)),
        compiler_params=pltpu.CompilerParams(
            dimension_semantics=("parallel",),
            vmem_limit_bytes=_VMEM_LIMIT,
        ),
        cost_estimate=pl.CostEstimate(
            flops=2 * B * R * HW * C + 2 * B * R * C * E,
            transcendentals=0,
            bytes_accessed=4 * (B * R * HW + B * HW * C + C * E + B * R * E),
        ),
    )(s_mat, feat_flat, w, bias.reshape(1, E))


# --------------------------------------------------------- FeatureExtraction / interpolation math
def au_centers(landmarks, center_left, center_right, location_scale):
    ruler = jnp.abs(landmarks[:, 0, 22] - landmarks[:, 0, 25])              # (B,)
    scales = ruler[:, None] * location_scale                                # (B, n)
    centers_left_x = landmarks[:, 0, center_left]                           # (B, n)
    centers_right_x = landmarks[:, 0, center_right]
    centers_left_y = landmarks[:, 1, center_left] + scales
    centers_right_y = landmarks[:, 1, center_right] + scales
    left = jnp.round(jnp.stack((centers_left_x, centers_left_y), axis=1))   # (B, 2, n)
    right = jnp.round(jnp.stack((centers_right_x, centers_right_y), axis=1))
    return left, right


def _bilinear_taps(idx, in_size, out_size):
    """PyTorch align_corners=False bilinear source indices/weights along one axis, evaluated at
    integer target coordinates `idx` (int32).  Returns (i0, i1, w0, w1)."""
    if in_size == out_size:                                  # PyTorch same-size shortcut
        return idx, idx, jnp.ones(idx.shape, jnp.float32), jnp.zeros(idx.shape, jnp.float32)
    scale = in_size / out_size
    src = jnp.maximum((idx.astype(jnp.float32) + 0.5) * scale - 0.5, 0.0)
    i0 = jnp.minimum(jnp.floor(src).astype(jnp.int32), in_size - 1)
    i1 = jnp.minimum(i0 + 1, in_size - 1)
    w1 = src - i0.astype(jnp.float32)
    return i0, i1, 1.0 - w1, w1


def blend_matrix(landmarks, center_left, center_right, location_scale, hp, wp, ht, wt):
    """(B, 2n, hp*wp) f32 matrix S such that  S @ feat.reshape(B, hp*wp, C)  equals
    F.interpolate(feat, (ht, wt), 'bilinear', align_corners=False) followed by the original
    FeatureExtraction AU-center pixel gather (left centers first, then right)."""
    left, right = au_centers(landmarks, center_left, center_right, location_scale)
    spatial_scale = min(ht, wt) / config.IMG_SIZE
    left = jnp.round(left * spatial_scale).astype(jnp.int32)                # (B, 2, n)
    right = jnp.round(right * spatial_scale).astype(jnp.int32)
    # Original indexing convention kept verbatim: the dim-0 ("x") coordinate is clamped with the
    # map WIDTH but indexes the H axis; dim-1 ("y") is clamped with the HEIGHT but indexes W
    # (inherited x/y swap -- exact for the square interp map used here).
    rows = jnp.concatenate([jnp.clip(left[:, 0], 0, wt - 1),
                            jnp.clip(right[:, 0], 0, wt - 1)], axis=1)      # (B, 2n): Ht axis
    cols = jnp.concatenate([jnp.clip(left[:, 1], 0, ht - 1),
                            jnp.clip(right[:, 1], 0, ht - 1)], axis=1)      # (B, 2n): Wt axis
    rows = jnp.clip(rows, 0, ht - 1)   # load-bearing safety clamps: keeps the one-hot in range
    cols = jnp.clip(cols, 0, wt - 1)   # even for non-square interp sizes
    y0, y1, wy0, wy1 = _bilinear_taps(rows, hp, ht)          # source rows into the (hp, wp) map
    x0, x1, wx0, wx1 = _bilinear_taps(cols, wp, wt)          # source cols
    flat = lambda y, x: y * wp + x                                           # row-major (hp, wp)
    tap_idx = jnp.stack([flat(y0, x0), flat(y0, x1), flat(y1, x0), flat(y1, x1)], axis=-1)
    tap_w = jnp.stack([wy0 * wx0, wy0 * wx1, wy1 * wx0, wy1 * wx1], axis=-1)  # (B, 2n, 4)
    onehot = jax.nn.one_hot(tap_idx, hp * wp, dtype=jnp.float32)              # (B, 2n, 4, hp*wp)
    return jnp.sum(onehot * tap_w[..., None], axis=2)        # duplicate (clamped) taps sum -> exact


# ------------------------------------------------------------------- backbone body (stand-in)
def backbone_body_nhwc(x_nchw, w_proj, b_proj, *, stride=4):
    """Stand-in for IntermediateLayerGetter(backbone)['0'] (ResNet layer4 features).

    Implemented as a stride-`stride` spatial subsample followed by a 1x1 conv (channel projection)
    + ReLU; the conv-as-matmul hot path runs in a Pallas kernel (VPU path for tiny Cin, tiled MXU
    path for large contraction depths).  Output is NHWC."""
    # TODO(synk): the real ResNet layer1-4 stack is replaced by a single strided 1x1-conv stand-in.
    B, Cin, H, W = x_nchw.shape
    xs = x_nchw[:, :, ::stride, ::stride]                                # (B, Cin, Hp, Wp)
    Hp, Wp = xs.shape[2], xs.shape[3]
    x_flat = jnp.transpose(xs, (0, 2, 3, 1)).reshape(B * Hp * Wp, Cin)   # channel on the lane dim
    y = pallas_linear(x_flat, w_proj, b_proj, relu=True)                 # (B*Hp*Wp, Cout)
    return y.reshape(B, Hp, Wp, w_proj.shape[1])                         # NHWC


# ------------------------------------------------------------------- BackboneBase.forward
def backbone_base_forward(params, tensors, landmarks, *, interp_size=(16, 16), stride=4):
    # note: train_backbone / requires_grad bookkeeping only affects training, not the forward pass.
    xs = backbone_body_nhwc(tensors, params["body_w"], params["body_b"], stride=stride)
    B, Hp, Wp, C = xs.shape
    Ht, Wt = interp_size
    # Fused: bilinear resize to interp_size + AU-center gather expressed as one small sparse blend
    # matrix (built from the landmark scalars), applied together with the shared nn.Linear in one
    # Pallas call -> the (B, Ht, Wt, C) resized map is never materialized in HBM.
    s_mat = blend_matrix(landmarks, params["center_left"], params["center_right"],
                         params["location_scale"], Hp, Wp, Ht, Wt)        # (B, 2n, Hp*Wp)
    feats = pallas_blend_linear(s_mat, xs.reshape(B, Hp * Wp, C),
                                params["lin_w"], params["lin_b"])         # (B, 2n, E)
    n_centers = params["center_left"].shape[0]
    to_enc = feats[:, :n_centers, :]
    to_dec = feats[:, n_centers:, :]
    return to_enc, to_dec


def init_params(key, cin, num_channels, embedding_dim):
    k1, k2, k3, k4 = jax.random.split(key, 4)
    inds = config.INDS
    return {
        "body_w": 0.05 * jax.random.normal(k1, (cin, num_channels), jnp.float32),
        "body_b": 0.01 * jax.random.normal(k2, (num_channels,), jnp.float32),
        "lin_w": 0.05 * jax.random.normal(k3, (num_channels, embedding_dim), jnp.float32),
        "lin_b": 0.01 * jax.random.normal(k4, (embedding_dim,), jnp.float32),
        "center_left": jnp.array([config.AU_CENTERS_LEFT[i] for i in inds], jnp.int32),
        "center_right": jnp.array([config.AU_CENTERS_RIGHT[i] for i in inds], jnp.int32),
        "location_scale": jnp.array([config.LOCATION_SCALE[i] for i in inds], jnp.float32),
    }


if __name__ == "__main__":
    key = jax.random.PRNGKey(0)
    kx, kl, kp, km1, km2 = jax.random.split(key, 5)

    B, Cin, H, W = 2, 3, 32, 32
    stride, interp_size = 4, (16, 16)
    num_channels, embedding_dim = 128, 128            # lane-dense (multiple of 128) kernel outputs
    n_centers = len(config.INDS)

    x = jax.random.normal(kx, (B, Cin, H, W), jnp.float32)
    landmarks = jax.random.uniform(kl, (B, 2, 68), jnp.float32) * config.IMG_SIZE
    params = init_params(kp, Cin, num_channels, embedding_dim)

    fwd = jax.jit(functools.partial(backbone_base_forward, interp_size=interp_size, stride=stride))
    to_enc, to_dec = fwd(params, x, landmarks)
    jax.block_until_ready((to_enc, to_dec))

    assert to_enc.shape == (B, n_centers, embedding_dim)
    assert to_dec.shape == (B, n_centers, embedding_dim)
    assert to_enc.dtype == jnp.float32 and to_dec.dtype == jnp.float32
    assert bool(jnp.all(jnp.isfinite(to_enc))) and bool(jnp.all(jnp.isfinite(to_dec)))

    # Pure-JAX reference of the full forward (same sampling math); loose tolerance covers the
    # bf16 MXU operands used inside the fused kernel.
    Hp, Wp = H // stride, W // stride
    x_flat = jnp.transpose(x[:, :, ::stride, ::stride], (0, 2, 3, 1)).reshape(B * Hp * Wp, Cin)
    xs_ref = jnp.maximum(x_flat @ params["body_w"] + params["body_b"], 0.0)
    xs_ref = xs_ref.reshape(B, Hp * Wp, num_channels)
    s_ref = blend_matrix(landmarks, params["center_left"], params["center_right"],
                         params["location_scale"], Hp, Wp, interp_size[0], interp_size[1])
    feats_ref = jnp.einsum("brh,bhc->brc", s_ref, xs_ref) @ params["lin_w"] + params["lin_b"]
    assert bool(jnp.allclose(to_enc, feats_ref[:, :n_centers], rtol=5e-2, atol=5e-3))
    assert bool(jnp.allclose(to_dec, feats_ref[:, n_centers:], rtol=5e-2, atol=5e-3))

    # Also exercise the tiled-MXU matmul path (used when the contraction depth is large).
    a = jax.random.normal(km1, (256, 64), jnp.float32)
    wmat = 0.05 * jax.random.normal(km2, (64, 128), jnp.float32)
    bvec = jnp.zeros((128,), jnp.float32)
    got = pallas_matmul_bias(a, wmat, bvec, relu=False)
    jax.block_until_ready(got)
    want = a @ wmat + bvec
    assert bool(jnp.allclose(got, want, rtol=5e-2, atol=5e-2))

    print("KERNEL_OK")
</pallas_src>

<mosaic_0001>
module attributes {stable_mosaic.version = 11 : i64} {
  func.func @_proj_small_k_kernel(%arg0: i32, %arg1: i32, %arg2: memref<128x3xf32, #tpu.memory_space<vmem>>, %arg3: memref<3x128xf32, #tpu.memory_space<vmem>>, %arg4: memref<1x128xf32, #tpu.memory_space<vmem>>, %arg5: memref<128x128xf32, #tpu.memory_space<vmem>>) attributes {dimension_semantics = [#tpu.dimension_semantics<parallel>, #tpu.dimension_semantics<parallel>], iteration_bounds = array<i64: 1, 1>, scalar_prefetch = 0 : i64, scratch_operands = 0 : i64, tpu.core_type = #tpu.core_type<tc>, window_params = [{transform_indices = @transform_0, window_bounds = array<i64: 128, 3>}, {transform_indices = @transform_1, window_bounds = array<i64: 3, 128>}, {transform_indices = @transform_2, window_bounds = array<i64: 1, 128>}, {transform_indices = @transform_3, window_bounds = array<i64: 128, 128>}]} {
    %c0 = arith.constant 0 : index
    %c0_0 = arith.constant 0 : index
    %0 = vector.load %arg2[%c0, %c0_0] : memref<128x3xf32, #tpu.memory_space<vmem>>, vector<128x3xf32>
    %c0_1 = arith.constant 0 : index
    %c0_2 = arith.constant 0 : index
    %1 = vector.load %arg3[%c0_1, %c0_2] : memref<3x128xf32, #tpu.memory_space<vmem>>, vector<3x128xf32>
    %c0_3 = arith.constant 0 : index
    %c0_4 = arith.constant 0 : index
    %2 = vector.load %arg4[%c0_3, %c0_4] : memref<1x128xf32, #tpu.memory_space<vmem>>, vector<1x128xf32>
    %3 = vector.shape_cast %2 : vector<1x128xf32> to vector<1x128xf32>
    %4 = vector.broadcast %3 : vector<1x128xf32> to vector<128x128xf32>
    %5 = vector.extract_strided_slice %0 {offsets = [0, 0], sizes = [128, 1], strides = [1, 1]} : vector<128x3xf32> to vector<128x1xf32>
    %6 = vector.extract_strided_slice %1 {offsets = [0, 0], sizes = [1, 128], strides = [1, 1]} : vector<3x128xf32> to vector<1x128xf32>
    %7 = vector.broadcast %5 : vector<128x1xf32> to vector<128x128xf32>
    %8 = vector.broadcast %6 : vector<1x128xf32> to vector<128x128xf32>
    %9 = arith.mulf %7, %8 : vector<128x128xf32>
    %10 = arith.addf %4, %9 : vector<128x128xf32>
    %11 = vector.extract_strided_slice %0 {offsets = [0, 1], sizes = [128, 1], strides = [1, 1]} : vector<128x3xf32> to vector<128x1xf32>
    %12 = vector.extract_strided_slice %1 {offsets = [1, 0], sizes = [1, 128], strides = [1, 1]} : vector<3x128xf32> to vector<1x128xf32>
    %13 = vector.broadcast %11 : vector<128x1xf32> to vector<128x128xf32>
    %14 = vector.broadcast %12 : vector<1x128xf32> to vector<128x128xf32>
    %15 = arith.mulf %13, %14 : vector<128x128xf32>
    %16 = arith.addf %10, %15 : vector<128x128xf32>
    %17 = vector.extract_strided_slice %0 {offsets = [0, 2], sizes = [128, 1], strides = [1, 1]} : vector<128x3xf32> to vector<128x1xf32>
    %18 = vector.extract_strided_slice %1 {offsets = [2, 0], sizes = [1, 128], strides = [1, 1]} : vector<3x128xf32> to vector<1x128xf32>
    %19 = vector.broadcast %17 : vector<128x1xf32> to vector<128x128xf32>
    %20 = vector.broadcast %18 : vector<1x128xf32> to vector<128x128xf32>
    %21 = arith.mulf %19, %20 : vector<128x128xf32>
    %22 = arith.addf %16, %21 : vector<128x128xf32>
    %cst = arith.constant 0.000000e+00 : f32
    %23 = vector.broadcast %cst : f32 to vector<128x128xf32>
    %24 = arith.maximumf %22, %23 : vector<128x128xf32>
    %c0_5 = arith.constant 0 : index
    %c0_6 = arith.constant 0 : index
    %25 = vector.load %arg5[%c0_5, %c0_6] : memref<128x128xf32, #tpu.memory_space<vmem>>, vector<128x128xf32>
    tpu.vector_store %arg5[%c0_5, %c0_6], %24 {strides = array<i32>} : memref<128x128xf32, #tpu.memory_space<vmem>>, vector<128x128xf32>,
    return
  }
  func.func @transform_0(%arg0: i32, %arg1: i32) -> (i32, i32) {
    %c0_i32 = arith.constant 0 : i32
    %c0_i32_0 = arith.constant 0 : i32
    return %arg0, %c0_i32 : i32, i32
  }
  func.func @transform_1(%arg0: i32, %arg1: i32) -> (i32, i32) {
    %c0_i32 = arith.constant 0 : i32
    %c0_i32_0 = arith.constant 0 : i32
    return %c0_i32, %arg1 : i32, i32
  }
  func.func @transform_2(%arg0: i32, %arg1: i32) -> (i32, i32) {
    %c0_i32 = arith.constant 0 : i32
    %c0_i32_0 = arith.constant 0 : i32
    return %c0_i32, %arg1 : i32, i32
  }
  func.func @transform_3(%arg0: i32, %arg1: i32) -> (i32, i32) {
    %c0_i32 = arith.constant 0 : i32
    return %arg0, %arg1 : i32, i32
  }
}

module attributes {stable_mosaic.version = 11 : i64} {
  func.func @_blend_linear_kernel(%arg0: i32, %arg1: memref<2x16x64xf32, #tpu.memory_space<vmem>>, %arg2: memref<2x64x128xf32, #tpu.memory_space<vmem>>, %arg3: memref<128x128xf32, #tpu.memory_space<vmem>>, %arg4: memref<1x128xf32, #tpu.memory_space<vmem>>, %arg5: memref<2x16x128xf32, #tpu.memory_space<vmem>>) attributes {dimension_semantics = [#tpu.dimension_semantics<parallel>], iteration_bounds = array<i64: 1>, scalar_prefetch = 0 : i64, scratch_operands = 0 : i64, tpu.core_type = #tpu.core_type<tc>, window_params = [{transform_indices = @transform_0, window_bounds = array<i64: 2, 16, 64>}, {transform_indices = @transform_1, window_bounds = array<i64: 2, 64, 128>}, {pipeline_mode = #tpu.pipeline_mode<synchronous>, transform_indices = @transform_2, window_bounds = array<i64: 128, 128>}, {pipeline_mode = #tpu.pipeline_mode<synchronous>, transform_indices = @transform_3, window_bounds = array<i64: 1, 128>}, {transform_indices = @transform_4, window_bounds = array<i64: 2, 16, 128>}]} {
    %c0 = arith.constant 0 : index
    %c0_0 = arith.constant 0 : index
    %0 = vector.load %arg3[%c0, %c0_0] : memref<128x128xf32, #tpu.memory_space<vmem>>, vector<128x128xf32>
    %1 = arith.truncf %0 : vector<128x128xf32> to vector<128x128xbf16>
    %c0_1 = arith.constant 0 : index
    %c0_2 = arith.constant 0 : index
    %2 = vector.load %arg4[%c0_1, %c0_2] : memref<1x128xf32, #tpu.memory_space<vmem>>, vector<1x128xf32>
    %c0_3 = arith.constant 0 : index
    %c0_4 = arith.constant 0 : index
    %c0_5 = arith.constant 0 : index
    %3 = vector.load %arg1[%c0_3, %c0_4, %c0_5] : memref<2x16x64xf32, #tpu.memory_space<vmem>>, vector<1x16x64xf32>
    %4 = vector.shape_cast %3 : vector<1x16x64xf32> to vector<16x64xf32>
    %c0_6 = arith.constant 0 : index
    %c0_7 = arith.constant 0 : index
    %c0_8 = arith.constant 0 : index
    %5 = vector.load %arg2[%c0_6, %c0_7, %c0_8] : memref<2x64x128xf32, #tpu.memory_space<vmem>>, vector<1x64x128xf32>
    %6 = vector.shape_cast %5 : vector<1x64x128xf32> to vector<64x128xf32>
    %7 = arith.truncf %4 : vector<16x64xf32> to vector<16x64xbf16>
    %8 = arith.truncf %6 : vector<64x128xf32> to vector<64x128xbf16>
    %cst = arith.constant dense<0.000000e+00> : vector<16x128xf32>
    %9 = tpu.matmul %7, %8, %cst {dimension_numbers = #tpu.dot_dimension_numbers<[1], [0], [0], [1], [0, 0, 1, 1], [], []>} : vector<16x64xbf16>, vector<64x128xbf16>, vector<16x128xf32> -> vector<16x128xf32>
    %10 = arith.truncf %9 : vector<16x128xf32> to vector<16x128xbf16>
    %cst_9 = arith.constant dense<0.000000e+00> : vector<16x128xf32>
    %11 = tpu.matmul %10, %1, %cst_9 {dimension_numbers = #tpu.dot_dimension_numbers<[1], [0], [0], [1], [0, 0, 1, 1], [], []>} : vector<16x128xbf16>, vector<128x128xbf16>, vector<16x128xf32> -> vector<16x128xf32>
    %12 = vector.broadcast %2 : vector<1x128xf32> to vector<16x128xf32>
    %13 = arith.addf %11, %12 : vector<16x128xf32>
    %c0_10 = arith.constant 0 : index
    %c0_11 = arith.constant 0 : index
    %c0_12 = arith.constant 0 : index
    %14 = vector.load %arg5[%c0_10, %c0_11, %c0_12] : memref<2x16x128xf32, #tpu.memory_space<vmem>>, vector<1x16x128xf32>
    %15 = vector.shape_cast %14 : vector<1x16x128xf32> to vector<16x128xf32>
    %16 = vector.shape_cast %13 : vector<16x128xf32> to vector<1x16x128xf32>
    tpu.vector_store %arg5[%c0_10, %c0_11, %c0_12], %16 {strides = array<i32>} : memref<2x16x128xf32, #tpu.memory_space<vmem>>, vector<1x16x128xf32>,
    %c1 = arith.constant 1 : index
    %c0_13 = arith.constant 0 : index
    %c0_14 = arith.constant 0 : index
    %17 = vector.load %arg1[%c1, %c0_13, %c0_14] : memref<2x16x64xf32, #tpu.memory_space<vmem>>, vector<1x16x64xf32>
    %18 = vector.shape_cast %17 : vector<1x16x64xf32> to vector<16x64xf32>
    %c1_15 = arith.constant 1 : index
    %c0_16 = arith.constant 0 : index
    %c0_17 = arith.constant 0 : index
    %19 = vector.load %arg2[%c1_15, %c0_16, %c0_17] : memref<2x64x128xf32, #tpu.memory_space<vmem>>, vector<1x64x128xf32>
    %20 = vector.shape_cast %19 : vector<1x64x128xf32> to vector<64x128xf32>
    %21 = arith.truncf %18 : vector<16x64xf32> to vector<16x64xbf16>
    %22 = arith.truncf %20 : vector<64x128xf32> to vector<64x128xbf16>
    %cst_18 = arith.constant dense<0.000000e+00> : vector<16x128xf32>
    %23 = tpu.matmul %21, %22, %cst_18 {dimension_numbers = #tpu.dot_dimension_numbers<[1], [0], [0], [1], [0, 0, 1, 1], [], []>} : vector<16x64xbf16>, vector<64x128xbf16>, vector<16x128xf32> -> vector<16x128xf32>
    %24 = arith.truncf %23 : vector<16x128xf32> to vector<16x128xbf16>
    %cst_19 = arith.constant dense<0.000000e+00> : vector<16x128xf32>
    %25 = tpu.matmul %24, %1, %cst_19 {dimension_numbers = #tpu.dot_dimension_numbers<[1], [0], [0], [1], [0, 0, 1, 1], [], []>} : vector<16x128xbf16>, vector<128x128xbf16>, vector<16x128xf32> -> vector<16x128xf32>
    %26 = vector.broadcast %2 : vector<1x128xf32> to vector<16x128xf32>
    %27 = arith.addf %25, %26 : vector<16x128xf32>
    %c1_20 = arith.constant 1 : index
    %c0_21 = arith.constant 0 : index
    %c0_22 = arith.constant 0 : index
    %28 = vector.load %arg5[%c1_20, %c0_21, %c0_22] : memref<2x16x128xf32, #tpu.memory_space<vmem>>, vector<1x16x128xf32>
    %29 = vector.shape_cast %28 : vector<1x16x128xf32> to vector<16x128xf32>
    %30 = vector.shape_cast %27 : vector<16x128xf32> to vector<1x16x128xf32>
    tpu.vector_store %arg5[%c1_20, %c0_21, %c0_22], %30 {strides = array<i32>} : memref<2x16x128xf32, #tpu.memory_space<vmem>>, vector<1x16x128xf32>,
    return
  }
  func.func @transform_0(%arg0: i32) -> (i32, i32, i32) {
    %c0_i32 = arith.constant 0 : i32
    %c0_i32_0 = arith.constant 0 : i32
    %c0_i32_1 = arith.constant 0 : i32
    return %arg0, %c0_i32, %c0_i32_0 : i32, i32, i32
  }
  func.func @transform_1(%arg0: i32) -> (i32, i32, i32) {
    %c0_i32 = arith.constant 0 : i32
    %c0_i32_0 = arith.constant 0 : i32
    %c0_i32_1 = arith.constant 0 : i32
    return %arg0, %c0_i32, %c0_i32_0 : i32, i32, i32
  }
  func.func @transform_2(%arg0: i32) -> (i32, i32) {
    %c0_i32 = arith.constant 0 : i32
    %c0_i32_0 = arith.constant 0 : i32
    %c0_i32_1 = arith.constant 0 : i32
    return %c0_i32, %c0_i32_0 : i32, i32
  }
  func.func @transform_3(%arg0: i32) -> (i32, i32) {
    %c0_i32 = arith.constant 0 : i32
    %c0_i32_0 = arith.constant 0 : i32
    %c0_i32_1 = arith.constant 0 : i32
    return %c0_i32, %c0_i32_0 : i32, i32
  }
  func.func @transform_4(%arg0: i32) -> (i32, i32, i32) {
    %c0_i32 = arith.constant 0 : i32
    %c0_i32_0 = arith.constant 0 : i32
    %c0_i32_1 = arith.constant 0 : i32
    return %arg0, %c0_i32, %c0_i32_0 : i32, i32, i32
  }
}

</mosaic_0001>

<llo_original>
// kernel: backbone_base_forward.3
$region0: #{backbone_base_forward.3}
  #allocation0 [shape = 'u32[]', space=smem, size = 0x4, offset = 0x4, fixed_abs, tag = 'smem constant byte address 0x4 - core index']
  #allocation1 [shape = 'u32[72,128]{1,0:T(1,128)}', space=vmem, size = 0x9000, scoped, tag = 'internal scratch']
  %s0 = inlined_call_operand.vmem [shape: f32[2,16,64], index: 0, kind: input, shape index: {}]
  %s1 = inlined_call_operand.vmem [shape: f32[2,64,128], index: 1, kind: input, shape index: {}]
  %s2 = inlined_call_operand.vmem [shape: f32[128,128], index: 2, kind: input, shape index: {}]
  %s3 = inlined_call_operand.vmem [shape: f32[1,128], index: 3, kind: input, shape index: {}]
  %s4 = inlined_call_operand.vmem [shape: f32[2,16,128], index: 4, kind: output, shape index: {}]
  %s5 = sld [smem:[#allocation0]]
  $region26: #{backbone_base_forward.3} parent=0
    _
  %s7 = ssub.s32 1, %s5
  %s8 = scalar_select 0, %s7, %s5
  // Predicated region
  $region2: #{backbone_base_forward.3} parent=0 // pred_check
    _
  $region3: #{backbone_base_forward.3} parent=0 // pred_check_branch
    %10 = sbr.rel (0) target = $region5
  $region4: #{backbone_base_forward.3} parent=0 // pred_region
    _
  $region5: #{backbone_base_forward.3} parent=0 // pred_fallthru
    _
  // Predicated region
  $region6: #{backbone_base_forward.3} parent=0 // pred_check
    _
  $region7: #{backbone_base_forward.3} parent=0 // pred_check_branch
    %12 = sbr.rel (0) target = $region9
  $region8: #{backbone_base_forward.3} parent=0 // pred_region
    _
  $region9: #{backbone_base_forward.3} parent=0 // pred_fallthru
    _
  // Predicated region
  $region10: #{backbone_base_forward.3} parent=0 // pred_check
    _
  $region11: #{backbone_base_forward.3} parent=0 // pred_check_branch
    %14 = sbr.rel (0) target = $region13
  $region12: #{backbone_base_forward.3} parent=0 // pred_region
    _
  $region13: #{backbone_base_forward.3} parent=0 // pred_fallthru
    _
  // Predicated region
  $region14: #{backbone_base_forward.3} parent=0 // pred_check
    _
  $region15: #{backbone_base_forward.3} parent=0 // pred_check_branch
    %16 = sbr.rel (0) target = $region17
  $region16: #{backbone_base_forward.3} parent=0 // pred_region
    _
  $region17: #{backbone_base_forward.3} parent=0 // pred_fallthru
    _
  %v18 = vld [vmem:[%s2] sm:$0xff]
  %v19 = vld [vmem:[%s2 + $0x8] sm:$0xff]
  %v20 = vld [vmem:[%s2 + $0x10] sm:$0xff]
  %v21 = vld [vmem:[%s2 + $0x18] sm:$0xff]
  %v22 = vld [vmem:[%s2 + $0x20] sm:$0xff]
  %v23 = vld [vmem:[%s2 + $0x28] sm:$0xff]
  %v24 = vld [vmem:[%s2 + $0x30] sm:$0xff]
  %v25 = vld [vmem:[%s2 + $0x38] sm:$0xff]
  %v26 = vld [vmem:[%s2 + $0x40] sm:$0xff]
  %v27 = vld [vmem:[%s2 + $0x48] sm:$0xff]
  %v28 = vld [vmem:[%s2 + $0x50] sm:$0xff]
  %v29 = vld [vmem:[%s2 + $0x58] sm:$0xff]
  %v30 = vld [vmem:[%s2 + $0x60] sm:$0xff]
  %v31 = vld [vmem:[%s2 + $0x68] sm:$0xff]
  %v32 = vld [vmem:[%s2 + $0x70] sm:$0xff]
  %v33 = vld [vmem:[%s2 + $0x78] sm:$0xff]
  %v34 = vpack.c.bf16 %v19, %v18
  %v35 = vpack.c.bf16 %v21, %v20
  %v36 = vpack.c.bf16 %v23, %v22
  %v37 = vpack.c.bf16 %v25, %v24
  %v38 = vpack.c.bf16 %v27, %v26
  %v39 = vpack.c.bf16 %v29, %v28
  %v40 = vpack.c.bf16 %v31, %v30
  %v41 = vpack.c.bf16 %v33, %v32
  %v42 = vld [vmem:[%s3] sm:$0x1]
  %v43 = vld [vmem:[%s0] sm:$0xff]
  %v44 = vld [vmem:[%s0 + $0x8] sm:$0xff]
  %v45 = vld [vmem:[%s1] sm:$0xff]
  %v46 = vld [vmem:[%s1 + $0x8] sm:$0xff]
  %v47 = vld [vmem:[%s1 + $0x10] sm:$0xff]
  %v48 = vld [vmem:[%s1 + $0x18] sm:$0xff]
  %v49 = vld [vmem:[%s1 + $0x20] sm:$0xff]
  %v50 = vld [vmem:[%s1 + $0x28] sm:$0xff]
  %v51 = vld [vmem:[%s1 + $0x30] sm:$0xff]
  %v52 = vld [vmem:[%s1 + $0x38] sm:$0xff]
  %v53 = vpack.c.bf16 %v44, %v43
  %v54 = vpack.c.bf16 %v46, %v45
  %v55 = vpack.c.bf16 %v48, %v47
  %v56 = vpack.c.bf16 %v50, %v49
  %v57 = vpack.c.bf16 %v52, %v51
  %vm58 = vcmask 523264
  %v60 = vsel %vm58, %v53, 0
  %62 = vmatpush.bf16.msra.mxu0 0
  %63 = vmatpush.bf16.msra.mxu0 0
  %64 = vmatpush.bf16.msra.mxu0 0
  %65 = vmatpush.bf16.msra.mxu0 0
  %66 = vmatpush.bf16.msra.mxu0 %v57
  %67 = vmatpush.bf16.msra.mxu0 %v56
  %68 = vmatpush.bf16.msra.mxu0 %v55
  %69 = vmatpush.bf16.msra.mxu0 %v54
  %70 = vmatmul.bf16.gmra.mxu0 %v60
  %v71 = vpop.f32.mrf.mxu0
  %v72 = vadd.f32 0.0, %v71
  %v73 = vpop.f32.mrf.mxu0
  %v74 = vadd.f32 0.0, %v73
  %75 = vdwg.mxu0
  %v76 = vpack.c.bf16 %v74, %v72
  %v78 = vperm.slane %v42, 0
  %80 = vmatpush.bf16.msra.mxu0 %v41
  %81 = vmatpush.bf16.msra.mxu0 %v40
  %82 = vmatpush.bf16.msra.mxu0 %v39
  %83 = vmatpush.bf16.msra.mxu0 %v38
  %84 = vmatpush.bf16.msra.mxu0 %v37
  %85 = vmatpush.bf16.msra.mxu0 %v36
  %86 = vmatpush.bf16.msra.mxu0 %v35
  %87 = vmatpush.bf16.msra.mxu0 %v34
  %88 = vmatmul.bf16.gmra.mxu0 %v76
  %v89 = vpop.f32.mrf.mxu0
  %v90 = vadd.f32 %v78, %v89
  %v91 = vpop.f32.mrf.mxu0
  %v92 = vadd.f32 %v78, %v91
  %93 = vdwg.mxu0
  %94 = vst [vmem:[%s4] sm:$0xff] %v90
  %95 = vst [vmem:[%s4 + $0x8] sm:$0xff] %v92
  %s96 = scalar_lea.vmem %s0, 16
  %v97 = vld [vmem:[%s96] sm:$0xff]
  %v98 = vld [vmem:[%s96 + $0x8] sm:$0xff]
  %s99 = scalar_lea.vmem %s1, 64
  %v100 = vld [vmem:[%s99] sm:$0xff]
  %v101 = vld [vmem:[%s99 + $0x8] sm:$0xff]
  %v102 = vld [vmem:[%s99 + $0x10] sm:$0xff]
  %v103 = vld [vmem:[%s99 + $0x18] sm:$0xff]
  %v104 = vld [vmem:[%s99 + $0x20] sm:$0xff]
  %v105 = vld [vmem:[%s99 + $0x28] sm:$0xff]
  %v106 = vld [vmem:[%s99 + $0x30] sm:$0xff]
  %v107 = vld [vmem:[%s99 + $0x38] sm:$0xff]
  %v108 = vpack.c.bf16 %v98, %v97
  %v109 = vpack.c.bf16 %v101, %v100
  %v110 = vpack.c.bf16 %v103, %v102
  %v111 = vpack.c.bf16 %v105, %v104
  %v112 = vpack.c.bf16 %v107, %v106
  %v114 = vsel %vm58, %v108, 0
  %116 = vmatpush.bf16.msra.mxu0 0
  %117 = vmatpush.bf16.msra.mxu0 0
  %118 = vmatpush.bf16.msra.mxu0 0
  %119 = vmatpush.bf16.msra.mxu0 0
  %120 = vmatpush.bf16.msra.mxu0 %v112
  %121 = vmatpush.bf16.msra.mxu0 %v111
  %122 = vmatpush.bf16.msra.mxu0 %v110
  %123 = vmatpush.bf16.msra.mxu0 %v109
  %124 = vmatmul.bf16.gmra.mxu0 %v114
  %v125 = vpop.f32.mrf.mxu0
  %v126 = vadd.f32 0.0, %v125
  %v127 = vpop.f32.mrf.mxu0
  %v128 = vadd.f32 0.0, %v127
  %129 = vdwg.mxu0
  %v130 = vpack.c.bf16 %v128, %v126
  %131 = vmatpush.bf16.msra.mxu0 %v41
  %132 = vmatpush.bf16.msra.mxu0 %v40
  %133 = vmatpush.bf16.msra.mxu0 %v39
  %134 = vmatpush.bf16.msra.mxu0 %v38
  %135 = vmatpush.bf16.msra.mxu0 %v37
  %136 = vmatpush.bf16.msra.mxu0 %v36
  %137 = vmatpush.bf16.msra.mxu0 %v35
  %138 = vmatpush.bf16.msra.mxu0 %v34
  %139 = vmatmul.bf16.gmra.mxu0 %v130
  %v140 = vpop.f32.mrf.mxu0
  %v141 = vadd.f32 %v78, %v140
  %v142 = vpop.f32.mrf.mxu0
  %v143 = vadd.f32 %v78, %v142
  %144 = vdwg.mxu0
  %s145 = scalar_lea.vmem %s4, 16
  %146 = vst [vmem:[%s145] sm:$0xff] %v141
  %147 = vst [vmem:[%s145 + $0x8] sm:$0xff] %v143
  // Predicated region
  $region18: #{backbone_base_forward.3} parent=0 // pred_check
    _
  $region19: #{backbone_base_forward.3} parent=0 // pred_check_branch
    %149 = sbr.rel (0) target = $region21
  $region20: #{backbone_base_forward.3} parent=0 // pred_region
    _
  $region21: #{backbone_base_forward.3} parent=0 // pred_fallthru
    _
  // Predicated region
  $region22: #{backbone_base_forward.3} parent=0 // pred_check
    _
  $region23: #{backbone_base_forward.3} parent=0 // pred_check_branch
    %151 = sbr.rel (0) target = $region25
  $region24: #{backbone_base_forward.3} parent=0 // pred_region
    _
  $region25: #{backbone_base_forward.3} parent=0 // pred_fallthru
    _

// kernel: backbone_base_forward.2
$region0: #{backbone_base_forward.2}
  #allocation0 [shape = 'u32[]', space=smem, size = 0x4, offset = 0x4, fixed_abs, tag = 'smem constant byte address 0x4 - core index']
  #allocation1 [shape = 'u32[72,128]{1,0:T(1,128)}', space=vmem, size = 0x9000, scoped, tag = 'internal scratch']
  %s0 = inlined_call_operand.vmem [shape: f32[128,3], index: 0, kind: input, shape index: {}]
  %s1 = inlined_call_operand.vmem [shape: f32[3,128], index: 1, kind: input, shape index: {}]
  %s2 = inlined_call_operand.vmem [shape: f32[1,128], index: 2, kind: input, shape index: {}]
  %s3 = inlined_call_operand.vmem [shape: f32[128,128], index: 3, kind: output, shape index: {}]
  %s4 = sld [smem:[#allocation0]]
  $region22: #{backbone_base_forward.2} parent=0
    _
  %s6 = ssub.s32 1, %s4
  %s7 = scalar_select 0, %s6, %s4
  // Predicated region
  $region2: #{backbone_base_forward.2} parent=0 // pred_check
    _
  $region3: #{backbone_base_forward.2} parent=0 // pred_check_branch
    %9 = sbr.rel (0) target = $region5
  $region4: #{backbone_base_forward.2} parent=0 // pred_region
    _
  $region5: #{backbone_base_forward.2} parent=0 // pred_fallthru
    _
  // Predicated region
  $region6: #{backbone_base_forward.2} parent=0 // pred_check
    _
  $region7: #{backbone_base_forward.2} parent=0 // pred_check_branch
    %11 = sbr.rel (0) target = $region9
  $region8: #{backbone_base_forward.2} parent=0 // pred_region
    _
  $region9: #{backbone_base_forward.2} parent=0 // pred_fallthru
    _
  // Predicated region
  $region10: #{backbone_base_forward.2} parent=0 // pred_check
    _
  $region11: #{backbone_base_forward.2} parent=0 // pred_check_branch
    %13 = sbr.rel (0) target = $region13
  $region12: #{backbone_base_forward.2} parent=0 // pred_region
    _
  $region13: #{backbone_base_forward.2} parent=0 // pred_fallthru
    _
  %v14 = vld [vmem:[%s0] sm:$0xff]
  %v15 = vld [vmem:[%s0 + $0x8] sm:$0xff]
  %v16 = vld [vmem:[%s0 + $0x10] sm:$0xff]
  %v17 = vld [vmem:[%s0 + $0x18] sm:$0xff]
  %v18 = vld [vmem:[%s0 + $0x20] sm:$0xff]
  %v19 = vld [vmem:[%s0 + $0x28] sm:$0xff]
  %v20 = vld [vmem:[%s0 + $0x30] sm:$0xff]
  %v21 = vld [vmem:[%s0 + $0x38] sm:$0xff]
  %v22 = vld [vmem:[%s0 + $0x40] sm:$0xff]
  %v23 = vld [vmem:[%s0 + $0x48] sm:$0xff]
  %v24 = vld [vmem:[%s0 + $0x50] sm:$0xff]
  %v25 = vld [vmem:[%s0 + $0x58] sm:$0xff]
  %v26 = vld [vmem:[%s0 + $0x60] sm:$0xff]
  %v27 = vld [vmem:[%s0 + $0x68] sm:$0xff]
  %v28 = vld [vmem:[%s0 + $0x70] sm:$0xff]
  %v29 = vld [vmem:[%s0 + $0x78] sm:$0xff]
  %v30 = vld [vmem:[%s1] sm:$0x7]
  %v31 = vld [vmem:[%s2] sm:$0x1]
  %v33 = vperm.slane %v31, 0
  %36 = vset.pattern.permute.xlu0 0
  %37 = vperm.xlu0 %36, %v14
  %v38 = vpop.permute.xlu0 %37
  %41 = vset.pattern.permute.xlu0 0
  %42 = vperm.xlu0 %41, %v15
  %v43 = vpop.permute.xlu0 %42
  %46 = vset.pattern.permute.xlu0 0
  %47 = vperm.xlu0 %46, %v16
  %v48 = vpop.permute.xlu0 %47
  %51 = vset.pattern.permute.xlu0 0
  %52 = vperm.xlu0 %51, %v17
  %v53 = vpop.permute.xlu0 %52
  %56 = vset.pattern.permute.xlu0 0
  %57 = vperm.xlu0 %56, %v18
  %v58 = vpop.permute.xlu0 %57
  %61 = vset.pattern.permute.xlu0 0
  %62 = vperm.xlu0 %61, %v19
  %v63 = vpop.permute.xlu0 %62
  %66 = vset.pattern.permute.xlu0 0
  %67 = vperm.xlu0 %66, %v20
  %v68 = vpop.permute.xlu0 %67
  %71 = vset.pattern.permute.xlu0 0
  %72 = vperm.xlu0 %71, %v21
  %v73 = vpop.permute.xlu0 %72
  %76 = vset.pattern.permute.xlu0 0
  %77 = vperm.xlu0 %76, %v22
  %v78 = vpop.permute.xlu0 %77
  %81 = vset.pattern.permute.xlu0 0
  %82 = vperm.xlu0 %81, %v23
  %v83 = vpop.permute.xlu0 %82
  %86 = vset.pattern.permute.xlu0 0
  %87 = vperm.xlu0 %86, %v24
  %v88 = vpop.permute.xlu0 %87
  %91 = vset.pattern.permute.xlu0 0
  %92 = vperm.xlu0 %91, %v25
  %v93 = vpop.permute.xlu0 %92
  %96 = vset.pattern.permute.xlu0 0
  %97 = vperm.xlu0 %96, %v26
  %v98 = vpop.permute.xlu0 %97
  %101 = vset.pattern.permute.xlu0 0
  %102 = vperm.xlu0 %101, %v27
  %v103 = vpop.permute.xlu0 %102
  %106 = vset.pattern.permute.xlu0 0
  %107 = vperm.xlu0 %106, %v28
  %v108 = vpop.permute.xlu0 %107
  %111 = vset.pattern.permute.xlu0 0
  %112 = vperm.xlu0 %111, %v29
  %v113 = vpop.permute.xlu0 %112
  %v115 = vperm.slane %v30, 0
  %v116 = vmul.f32 %v38, %v115
  %v117 = vmul.f32 %v43, %v115
  %v118 = vmul.f32 %v48, %v115
  %v119 = vmul.f32 %v53, %v115
  %v120 = vmul.f32 %v58, %v115
  %v121 = vmul.f32 %v63, %v115
  %v122 = vmul.f32 %v68, %v115
  %v123 = vmul.f32 %v73, %v115
  %v124 = vmul.f32 %v78, %v115
  %v125 = vmul.f32 %v83, %v115
  %v126 = vmul.f32 %v88, %v115
  %v127 = vmul.f32 %v93, %v115
  %v128 = vmul.f32 %v98, %v115
  %v129 = vmul.f32 %v103, %v115
  %v130 = vmul.f32 %v108, %v115
  %v131 = vmul.f32 %v113, %v115
  %v132 = vadd.f32 %v33, %v116
  %v133 = vadd.f32 %v33, %v117
  %v134 = vadd.f32 %v33, %v118
  %v135 = vadd.f32 %v33, %v119
  %v136 = vadd.f32 %v33, %v120
  %v137 = vadd.f32 %v33, %v121
  %v138 = vadd.f32 %v33, %v122
  %v139 = vadd.f32 %v33, %v123
  %v140 = vadd.f32 %v33, %v124
  %v141 = vadd.f32 %v33, %v125
  %v142 = vadd.f32 %v33, %v126
  %v143 = vadd.f32 %v33, %v127
  %v144 = vadd.f32 %v33, %v128
  %v145 = vadd.f32 %v33, %v129
  %v146 = vadd.f32 %v33, %v130
  %v147 = vadd.f32 %v33, %v131
  %148 = vset.pattern.permute.xlu0 1
  %149 = vperm.xlu0 %148, %v14
  %v150 = vpop.permute.xlu0 %149
  %152 = vset.pattern.permute.xlu0 1
  %153 = vperm.xlu0 %152, %v15
  %v154 = vpop.permute.xlu0 %153
  %156 = vset.pattern.permute.xlu0 1
  %157 = vperm.xlu0 %156, %v16
  %v158 = vpop.permute.xlu0 %157
  %160 = vset.pattern.permute.xlu0 1
  %161 = vperm.xlu0 %160, %v17
  %v162 = vpop.permute.xlu0 %161
  %164 = vset.pattern.permute.xlu0 1
  %165 = vperm.xlu0 %164, %v18
  %v166 = vpop.permute.xlu0 %165
  %168 = vset.pattern.permute.xlu0 1
  %169 = vperm.xlu0 %168, %v19
  %v170 = vpop.permute.xlu0 %169
  %172 = vset.pattern.permute.xlu0 1
  %173 = vperm.xlu0 %172, %v20
  %v174 = vpop.permute.xlu0 %173
  %176 = vset.pattern.permute.xlu0 1
  %177 = vperm.xlu0 %176, %v21
  %v178 = vpop.permute.xlu0 %177
  %180 = vset.pattern.permute.xlu0 1
  %181 = vperm.xlu0 %180, %v22
  %v182 = vpop.permute.xlu0 %181
  %184 = vset.pattern.permute.xlu0 1
  %185 = vperm.xlu0 %184, %v23
  %v186 = vpop.permute.xlu0 %185
  %188 = vset.pattern.permute.xlu0 1
  %189 = vperm.xlu0 %188, %v24
  %v190 = vpop.permute.xlu0 %189
  %192 = vset.pattern.permute.xlu0 1
  %193 = vperm.xlu0 %192, %v25
  %v194 = vpop.permute.xlu0 %193
  %196 = vset.pattern.permute.xlu0 1
  %197 = vperm.xlu0 %196, %v26
  %v198 = vpop.permute.xlu0 %197
  %200 = vset.pattern.permute.xlu0 1
  %201 = vperm.xlu0 %200, %v27
  %v202 = vpop.permute.xlu0 %201
  %204 = vset.pattern.permute.xlu0 1
  %205 = vperm.xlu0 %204, %v28
  %v206 = vpop.permute.xlu0 %205
  %208 = vset.pattern.permute.xlu0 1
  %209 = vperm.xlu0 %208, %v29
  %v210 = vpop.permute.xlu0 %209
  %v212 = vperm.slane %v30, 1
  %v213 = vmul.f32 %v150, %v212
  %v214 = vmul.f32 %v154, %v212
  %v215 = vmul.f32 %v158, %v212
  %v216 = vmul.f32 %v162, %v212
  %v217 = vmul.f32 %v166, %v212
  %v218 = vmul.f32 %v170, %v212
  %v219 = vmul.f32 %v174, %v212
  %v220 = vmul.f32 %v178, %v212
  %v221 = vmul.f32 %v182, %v212
  %v222 = vmul.f32 %v186, %v212
  %v223 = vmul.f32 %v190, %v212
  %v224 = vmul.f32 %v194, %v212
  %v225 = vmul.f32 %v198, %v212
  %v226 = vmul.f32 %v202, %v212
  %v227 = vmul.f32 %v206, %v212
  %v228 = vmul.f32 %v210, %v212
  %v229 = vadd.f32 %v132, %v213
  %v230 = vadd.f32 %v133, %v214
  %v231 = vadd.f32 %v134, %v215
  %v232 = vadd.f32 %v135, %v216
  %v233 = vadd.f32 %v136, %v217
  %v234 = vadd.f32 %v137, %v218
  %v235 = vadd.f32 %v138, %v219
  %v236 = vadd.f32 %v139, %v220
  %v237 = vadd.f32 %v140, %v221
  %v238 = vadd.f32 %v141, %v222
  %v239 = vadd.f32 %v142, %v223
  %v240 = vadd.f32 %v143, %v224
  %v241 = vadd.f32 %v144, %v225
  %v242 = vadd.f32 %v145, %v226
  %v243 = vadd.f32 %v146, %v227
  %v244 = vadd.f32 %v147, %v228
  %245 = vset.pattern.permute.xlu0 2
  %246 = vperm.xlu0 %245, %v14
  %v247 = vpop.permute.xlu0 %246
  %249 = vset.pattern.permute.xlu0 2
  %250 = vperm.xlu0 %249, %v15
  %v251 = vpop.permute.xlu0 %250
  %253 = vset.pattern.permute.xlu0 2
  %254 = vperm.xlu0 %253, %v16
  %v255 = vpop.permute.xlu0 %254
  %257 = vset.pattern.permute.xlu0 2
  %258 = vperm.xlu0 %257, %v17
  %v259 = vpop.permute.xlu0 %258
  %261 = vset.pattern.permute.xlu0 2
  %262 = vperm.xlu0 %261, %v18
  %v263 = vpop.permute.xlu0 %262
  %265 = vset.pattern.permute.xlu0 2
  %266 = vperm.xlu0 %265, %v19
  %v267 = vpop.permute.xlu0 %266
  %269 = vset.pattern.permute.xlu0 2
  %270 = vperm.xlu0 %269, %v20
  %v271 = vpop.permute.xlu0 %270
  %273 = vset.pattern.permute.xlu0 2
  %274 = vperm.xlu0 %273, %v21
  %v275 = vpop.permute.xlu0 %274
  %277 = vset.pattern.permute.xlu0 2
  %278 = vperm.xlu0 %277, %v22
  %v279 = vpop.permute.xlu0 %278
  %281 = vset.pattern.permute.xlu0 2
  %282 = vperm.xlu0 %281, %v23
  %v283 = vpop.permute.xlu0 %282
  %285 = vset.pattern.permute.xlu0 2
  %286 = vperm.xlu0 %285, %v24
  %v287 = vpop.permute.xlu0 %286
  %289 = vset.pattern.permute.xlu0 2
  %290 = vperm.xlu0 %289, %v25
  %v291 = vpop.permute.xlu0 %290
  %293 = vset.pattern.permute.xlu0 2
  %294 = vperm.xlu0 %293, %v26
  %v295 = vpop.permute.xlu0 %294
  %297 = vset.pattern.permute.xlu0 2
  %298 = vperm.xlu0 %297, %v27
  %v299 = vpop.permute.xlu0 %298
  %301 = vset.pattern.permute.xlu0 2
  %302 = vperm.xlu0 %301, %v28
  %v303 = vpop.permute.xlu0 %302
  %305 = vset.pattern.permute.xlu0 2
  %306 = vperm.xlu0 %305, %v29
  %v307 = vpop.permute.xlu0 %306
  %v309 = vperm.slane %v30, 2
  %v310 = vmul.f32 %v247, %v309
  %v311 = vmul.f32 %v251, %v309
  %v312 = vmul.f32 %v255, %v309
  %v313 = vmul.f32 %v259, %v309
  %v314 = vmul.f32 %v263, %v309
  %v315 = vmul.f32 %v267, %v309
  %v316 = vmul.f32 %v271, %v309
  %v317 = vmul.f32 %v275, %v309
  %v318 = vmul.f32 %v279, %v309
  %v319 = vmul.f32 %v283, %v309
  %v320 = vmul.f32 %v287, %v309
  %v321 = vmul.f32 %v291, %v309
  %v322 = vmul.f32 %v295, %v309
  %v323 = vmul.f32 %v299, %v309
  %v324 = vmul.f32 %v303, %v309
  %v325 = vmul.f32 %v307, %v309
  %v326 = vadd.f32 %v229, %v310
  %v327 = vadd.f32 %v230, %v311
  %v328 = vadd.f32 %v231, %v312
  %v329 = vadd.f32 %v232, %v313
  %v330 = vadd.f32 %v233, %v314
  %v331 = vadd.f32 %v234, %v315
  %v332 = vadd.f32 %v235, %v316
  %v333 = vadd.f32 %v236, %v317
  %v334 = vadd.f32 %v237, %v318
  %v335 = vadd.f32 %v238, %v319
  %v336 = vadd.f32 %v239, %v320
  %v337 = vadd.f32 %v240, %v321
  %v338 = vadd.f32 %v241, %v322
  %v339 = vadd.f32 %v242, %v323
  %v340 = vadd.f32 %v243, %v324
  %v341 = vadd.f32 %v244, %v325
  %v342 = vmax.f32 %v326, 0.0
  %v343 = vmax.f32 %v327, 0.0
  %v344 = vmax.f32 %v328, 0.0
  %v345 = vmax.f32 %v329, 0.0
  %v346 = vmax.f32 %v330, 0.0
  %v347 = vmax.f32 %v331, 0.0
  %v348 = vmax.f32 %v332, 0.0
  %v349 = vmax.f32 %v333, 0.0
  %v350 = vmax.f32 %v334, 0.0
  %v351 = vmax.f32 %v335, 0.0
  %v352 = vmax.f32 %v336, 0.0
  %v353 = vmax.f32 %v337, 0.0
  %v354 = vmax.f32 %v338, 0.0
  %v355 = vmax.f32 %v339, 0.0
  %v356 = vmax.f32 %v340, 0.0
  %v357 = vmax.f32 %v341, 0.0
  %358 = vst [vmem:[%s3] sm:$0xff] %v342
  %359 = vst [vmem:[%s3 + $0x8] sm:$0xff] %v343
  %360 = vst [vmem:[%s3 + $0x10] sm:$0xff] %v344
  %361 = vst [vmem:[%s3 + $0x18] sm:$0xff] %v345
  %362 = vst [vmem:[%s3 + $0x20] sm:$0xff] %v346
  %363 = vst [vmem:[%s3 + $0x28] sm:$0xff] %v347
  %364 = vst [vmem:[%s3 + $0x30] sm:$0xff] %v348
  %365 = vst [vmem:[%s3 + $0x38] sm:$0xff] %v349
  %366 = vst [vmem:[%s3 + $0x40] sm:$0xff] %v350
  %367 = vst [vmem:[%s3 + $0x48] sm:$0xff] %v351
  %368 = vst [vmem:[%s3 + $0x50] sm:$0xff] %v352
  %369 = vst [vmem:[%s3 + $0x58] sm:$0xff] %v353
  %370 = vst [vmem:[%s3 + $0x60] sm:$0xff] %v354
  %371 = vst [vmem:[%s3 + $0x68] sm:$0xff] %v355
  %372 = vst [vmem:[%s3 + $0x70] sm:$0xff] %v356
  %373 = vst [vmem:[%s3 + $0x78] sm:$0xff] %v357
  // Predicated region
  $region14: #{backbone_base_forward.2} parent=0 // pred_check
    _
  $region15: #{backbone_base_forward.2} parent=0 // pred_check_branch
    %375 = sbr.rel (0) target = $region17
  $region16: #{backbone_base_forward.2} parent=0 // pred_region
    _
  $region17: #{backbone_base_forward.2} parent=0 // pred_fallthru
    _
  // Predicated region
  $region18: #{backbone_base_forward.2} parent=0 // pred_check
    _
  $region19: #{backbone_base_forward.2} parent=0 // pred_check_branch
    %377 = sbr.rel (0) target = $region21
  $region20: #{backbone_base_forward.2} parent=0 // pred_region
    _
  $region21: #{backbone_base_forward.2} parent=0 // pred_fallthru
    _

</llo_original>
